<compile_context>
chip_gen: v7x
topology: tpu7x:2x2x1
jax: 0.10.0
libtpu: 0.0.40
codegen_flags: <defaults>
</compile_context>

<pallas_src>
import functools
import math

import jax
import jax.numpy as jnp
from jax.experimental import pallas as pl
from jax.experimental.pallas import tpu as pltpu


def _round_up(x, m):
    return ((x + m - 1) // m) * m


def subcenter_loss_kernel(x_ref, lab_ref, loss_ref, acc_ref, *,
                          cos_m, sin_m, th, mmm, scale, easy_margin,
                          num_classes, batch_real, batch_pad, tile_b):
    step = pl.program_id(0)

    @pl.when(step == 0)
    def _init():
        acc_ref[...] = jnp.zeros_like(acc_ref)

    x = x_ref[...].astype(jnp.float32)      # (TB, K, Cp)
    lab = lab_ref[...]                      # (TB, 1) int32

    # Sub-center pooling: max over the K sub-centers (sublane reduce on XLU).
    cosine = jnp.max(x, axis=1)             # (TB, Cp)
    tb, cp = cosine.shape

    # ArcFace additive angular margin on the target class.
    sine = jnp.sqrt(1.0 - cosine * cosine)
    phi = cosine * cos_m - sine * sin_m
    if easy_margin:
        phi = jnp.where(cosine > 0.0, phi, cosine)
    else:
        phi = jnp.where(cosine > th, phi, cosine - mmm)

    col = jax.lax.broadcasted_iota(jnp.int32, (tb, cp), 1)
    onehot = col == lab                     # (TB, Cp) bool, no scatter needed
    logits = scale * jnp.where(onehot, phi, cosine)

    if cp > num_classes:                    # mask lane-padded class columns
        logits = jnp.where(col < num_classes, logits, jnp.float32(-1e30))

    # Row-wise cross entropy: logsumexp(logits) - logits[label].
    mx = jnp.max(logits, axis=1, keepdims=True)                         # (TB,1)
    lse = mx + jnp.log(jnp.sum(jnp.exp(logits - mx), axis=1, keepdims=True))
    logit_at_label = jnp.sum(jnp.where(onehot, logits, 0.0), axis=1,
                             keepdims=True)                             # (TB,1)
    per_row = lse - logit_at_label

    if batch_pad > batch_real:              # mask batch-padding rows
        row = jax.lax.broadcasted_iota(jnp.int32, (tb, 1), 0) + step * tile_b
        per_row = jnp.where(row < batch_real, per_row, 0.0)

    acc_ref[...] += jnp.sum(per_row, axis=0, keepdims=True)

    @pl.when(step == pl.num_programs(0) - 1)
    def _finalize():
        # CrossEntropyLoss default reduction='mean' over the real batch size.
        loss_ref[...] = acc_ref[...] * (1.0 / batch_real)


def subcenter_loss(inp, label, *, margin=0.2, scale=32.0, easy_margin=False,
                   K=3):
    """inp: [B, C*K] cosine similarities, label: [B] int -> scalar f32 loss."""
    B, CK = inp.shape
    assert CK % K == 0, "feature dim must be num_classes * K"
    C = CK // K

    cos_m = math.cos(margin)
    sin_m = math.sin(margin)
    th = math.cos(math.pi - margin)
    mmm = 1.0 + math.cos(math.pi - margin)

    # [B, C*K] -> [B, C, K] -> [B, K, C]: class axis on lanes (lane-dense),
    # the K sub-centers on sublanes.  Pure layout plumbing, done by XLA.
    x = jnp.transpose(inp.reshape(B, C, K), (0, 2, 1))

    # Pad the class axis to a lane multiple of 128 (masked inside the kernel).
    Cp = _round_up(C, 128)
    if Cp != C:
        x = jnp.pad(x, ((0, 0), (0, 0), (0, Cp - C)))

    # Batch tile: keep 2x double-buffered input tiles well under the VMEM
    # limit on all generations (v7x has only 64 MiB physical VMEM).
    k_sub = _round_up(K, 8)                       # sublane padding of K axis
    bytes_per_row = k_sub * Cp * x.dtype.itemsize
    tb = (8 * 1024 * 1024) // (2 * bytes_per_row)
    tb = max(8, min(512, (tb // 8) * 8))
    tb = min(tb, _round_up(B, 8))
    # TODO(synk): for very large class counts (C*4B per row > a few MiB), also
    # tile C with an online (flash-style) logsumexp instead of a full-row tile.

    Bp = _round_up(B, tb)
    if Bp != B:
        x = jnp.pad(x, ((0, Bp - B), (0, 0), (0, 0)))
        label = jnp.pad(label, (0, Bp - B))
    lab2d = label.reshape(Bp, 1).astype(jnp.int32)

    kernel = functools.partial(
        subcenter_loss_kernel,
        cos_m=float(cos_m), sin_m=float(sin_m), th=float(th), mmm=float(mmm),
        scale=float(scale), easy_margin=bool(easy_margin),
        num_classes=int(C), batch_real=int(B), batch_pad=int(Bp),
        tile_b=int(tb))

    out = pl.pallas_call(
        kernel,
        out_shape=jax.ShapeDtypeStruct((1, 1), jnp.float32),
        grid=(Bp // tb,),
        in_specs=[
            pl.BlockSpec((tb, K, Cp), lambda i: (i, 0, 0)),   # sub-center cosines
            pl.BlockSpec((tb, 1), lambda i: (i, 0)),          # labels
        ],
        out_specs=pl.BlockSpec((1, 1), lambda i: (0, 0)),     # resident scalar
        scratch_shapes=[pltpu.VMEM((1, 1), jnp.float32)],     # loss accumulator
        compiler_params=pltpu.CompilerParams(
            dimension_semantics=("arbitrary",),               # reduction axis
            vmem_limit_bytes=32 * 1024 * 1024),
    )(x, lab2d)
    return out[0, 0]


def subcenter_loss_ref(inp, label, *, margin=0.2, scale=32.0,
                       easy_margin=False, K=3):
    """Pure-JAX reference mirroring the PyTorch forward."""
    B, CK = inp.shape
    C = CK // K
    cosine = jnp.max(inp.reshape(B, C, K), axis=2)
    sine = jnp.sqrt(1.0 - cosine * cosine)
    cos_m = math.cos(margin)
    sin_m = math.sin(margin)
    th = math.cos(math.pi - margin)
    mmm = 1.0 + math.cos(math.pi - margin)
    phi = cosine * cos_m - sine * sin_m
    if easy_margin:
        phi = jnp.where(cosine > 0.0, phi, cosine)
    else:
        phi = jnp.where(cosine > th, phi, cosine - mmm)
    onehot = jax.nn.one_hot(label, C, dtype=cosine.dtype)
    output = scale * (onehot * phi + (1.0 - onehot) * cosine)
    lse = jax.scipy.special.logsumexp(output, axis=1)
    out_at_label = jnp.sum(output * onehot, axis=1)
    return jnp.mean(lse - out_at_label)     # CrossEntropyLoss(reduction='mean')


if __name__ == "__main__":
    key = jax.random.PRNGKey(0)
    kx, kl = jax.random.split(key)

    B, C, K = 8, 16, 3            # batch, num classes, sub-centers -> input [8, 48]
    margin, scale = 0.2, 32.0

    # sub-center cosine similarities in (-1, 1)
    inp = jnp.tanh(jax.random.normal(kx, (B, C * K), dtype=jnp.float32))
    label = jax.random.randint(kl, (B,), 0, C, dtype=jnp.int32)

    loss = subcenter_loss(inp, label, margin=margin, scale=scale, K=K)
    loss = jax.block_until_ready(loss)

    ref = jax.block_until_ready(
        subcenter_loss_ref(inp, label, margin=margin, scale=scale, K=K))
    assert jnp.allclose(loss, ref, rtol=1e-5, atol=1e-5), (loss, ref)

    print("KERNEL_OK")
</pallas_src>

<mosaic_0001>
module attributes {stable_mosaic.version = 11 : i64} {
  func.func @subcenter_loss_kernel(%arg0: i32, %arg1: memref<8x3x128xf32, #tpu.memory_space<vmem>>, %arg2: memref<8x1xi32, #tpu.memory_space<vmem>>, %arg3: memref<1x1xf32, #tpu.memory_space<vmem>>, %arg4: memref<1x1xf32, #tpu.memory_space<vmem>>) attributes {dimension_semantics = [#tpu.dimension_semantics<arbitrary>], iteration_bounds = array<i64: 1>, scalar_prefetch = 0 : i64, scratch_operands = 1 : i64, tpu.core_type = #tpu.core_type<tc>, window_params = [{transform_indices = @transform_0, window_bounds = array<i64: 8, 3, 128>}, {transform_indices = @transform_1, window_bounds = array<i64: 8, 1>}, {pipeline_mode = #tpu.pipeline_mode<synchronous>, transform_indices = @transform_2, window_bounds = array<i64: 1, 1>}]} {
    %c0_i32 = arith.constant 0 : i32
    %0 = arith.cmpi eq, %arg0, %c0_i32 : i32
    %1 = arith.extui %0 : i1 to i32
    %c0_i32_0 = arith.constant 0 : i32
    %2 = arith.cmpi ne, %1, %c0_i32_0 : i32
    scf.if %2 {
      %cst_23 = arith.constant 0.000000e+00 : f32
      %52 = vector.broadcast %cst_23 : f32 to vector<1x1xf32>
      %c0_24 = arith.constant 0 : index
      %c0_25 = arith.constant 0 : index
      %53 = vector.load %arg4[%c0_24, %c0_25] : memref<1x1xf32, #tpu.memory_space<vmem>>, vector<1x1xf32>
      tpu.vector_store %arg4[%c0_24, %c0_25], %52 {strides = array<i32>} : memref<1x1xf32, #tpu.memory_space<vmem>>, vector<1x1xf32>,
    } else {
    }
    %c0 = arith.constant 0 : index
    %c0_1 = arith.constant 0 : index
    %c0_2 = arith.constant 0 : index
    %3 = vector.load %arg1[%c0, %c0_1, %c0_2] : memref<8x3x128xf32, #tpu.memory_space<vmem>>, vector<8x3x128xf32>
    %c0_3 = arith.constant 0 : index
    %c0_4 = arith.constant 0 : index
    %4 = vector.load %arg2[%c0_3, %c0_4] : memref<8x1xi32, #tpu.memory_space<vmem>>, vector<8x1xi32>
    %cst = arith.constant dense<0xFF800000> : vector<8x128xf32>
    %5 = vector.multi_reduction <maximumf>, %3, %cst [1] : vector<8x3x128xf32> to vector<8x128xf32>
    %6 = arith.mulf %5, %5 : vector<8x128xf32>
    %cst_5 = arith.constant 1.000000e+00 : f32
    %7 = vector.broadcast %cst_5 : f32 to vector<8x128xf32>
    %8 = arith.subf %7, %6 : vector<8x128xf32>
    %9 = math.sqrt %8 : vector<8x128xf32>
    %cst_6 = arith.constant 0.980066597 : f32
    %10 = vector.broadcast %cst_6 : f32 to vector<8x128xf32>
    %11 = arith.mulf %5, %10 : vector<8x128xf32>
    %cst_7 = arith.constant 0.198669329 : f32
    %12 = vector.broadcast %cst_7 : f32 to vector<8x128xf32>
    %13 = arith.mulf %9, %12 : vector<8x128xf32>
    %14 = arith.subf %11, %13 : vector<8x128xf32>
    %cst_8 = arith.constant -0.980066597 : f32
    %15 = vector.broadcast %cst_8 : f32 to vector<8x128xf32>
    %16 = arith.cmpf ogt, %5, %15 : vector<8x128xf32>
    %cst_9 = arith.constant 0.019933423 : f32
    %17 = vector.broadcast %cst_9 : f32 to vector<8x128xf32>
    %18 = arith.subf %5, %17 : vector<8x128xf32>
    %19 = arith.select %16, %14, %18 : vector<8x128xi1>, vector<8x128xf32>
    %20 = tpu.iota {dimensions = array<i32: 1>} : vector<8x128xi32>
    %21 = vector.broadcast %4 : vector<8x1xi32> to vector<8x128xi32>
    %22 = arith.cmpi eq, %20, %21 : vector<8x128xi32>
    %23 = arith.select %22, %19, %5 : vector<8x128xi1>, vector<8x128xf32>
    %cst_10 = arith.constant 3.200000e+01 : f32
    %24 = vector.broadcast %cst_10 : f32 to vector<8x128xf32>
    %25 = arith.mulf %24, %23 : vector<8x128xf32>
    %c16_i32 = arith.constant 16 : i32
    %26 = vector.broadcast %c16_i32 : i32 to vector<8x128xi32>
    %27 = arith.cmpi slt, %20, %26 : vector<8x128xi32>
    %cst_11 = arith.constant -1.000000e+30 : f32
    %28 = vector.broadcast %cst_11 : f32 to vector<8x128xf32>
    %29 = arith.select %27, %25, %28 : vector<8x128xi1>, vector<8x128xf32>
    %cst_12 = arith.constant dense<0xFF800000> : vector<8xf32>
    %30 = vector.multi_reduction <maximumf>, %29, %cst_12 [1] : vector<8x128xf32> to vector<8xf32>
    %31 = vector.shape_cast %30 : vector<8xf32> to vector<8x1xf32>
    %32 = vector.broadcast %31 : vector<8x1xf32> to vector<8x128xf32>
    %33 = arith.subf %29, %32 : vector<8x128xf32>
    %34 = math.exp %33 : vector<8x128xf32>
    %cst_13 = arith.constant dense<0.000000e+00> : vector<8xf32>
    %35 = vector.multi_reduction <add>, %34, %cst_13 [1] : vector<8x128xf32> to vector<8xf32>
    %36 = vector.shape_cast %35 : vector<8xf32> to vector<8x1xf32>
    %37 = math.log %36 : vector<8x1xf32>
    %38 = arith.addf %31, %37 : vector<8x1xf32>
    %cst_14 = arith.constant 0.000000e+00 : f32
    %39 = vector.broadcast %cst_14 : f32 to vector<8x128xf32>
    %40 = arith.select %22, %29, %39 : vector<8x128xi1>, vector<8x128xf32>
    %cst_15 = arith.constant dense<0.000000e+00> : vector<8xf32>
    %41 = vector.multi_reduction <add>, %40, %cst_15 [1] : vector<8x128xf32> to vector<8xf32>
    %42 = vector.shape_cast %41 : vector<8xf32> to vector<8x1xf32>
    %43 = arith.subf %38, %42 : vector<8x1xf32>
    %c0_16 = arith.constant 0 : index
    %c0_17 = arith.constant 0 : index
    %44 = vector.load %arg4[%c0_16, %c0_17] : memref<1x1xf32, #tpu.memory_space<vmem>>, vector<1x1xf32>
    %cst_18 = arith.constant dense<0.000000e+00> : vector<1xf32>
    %45 = vector.multi_reduction <add>, %43, %cst_18 [0] : vector<8x1xf32> to vector<1xf32>
    %46 = vector.shape_cast %45 : vector<1xf32> to vector<1x1xf32>
    %47 = arith.addf %44, %46 : vector<1x1xf32>
    %c0_19 = arith.constant 0 : index
    %c0_20 = arith.constant 0 : index
    %48 = vector.load %arg4[%c0_19, %c0_20] : memref<1x1xf32, #tpu.memory_space<vmem>>, vector<1x1xf32>
    tpu.vector_store %arg4[%c0_19, %c0_20], %47 {strides = array<i32>} : memref<1x1xf32, #tpu.memory_space<vmem>>, vector<1x1xf32>,
    %c0_i32_21 = arith.constant 0 : i32
    %49 = arith.cmpi eq, %arg0, %c0_i32_21 : i32
    %50 = arith.extui %49 : i1 to i32
    %c0_i32_22 = arith.constant 0 : i32
    %51 = arith.cmpi ne, %50, %c0_i32_22 : i32
    scf.if %51 {
      %c0_23 = arith.constant 0 : index
      %c0_24 = arith.constant 0 : index
      %52 = vector.load %arg4[%c0_23, %c0_24] : memref<1x1xf32, #tpu.memory_space<vmem>>, vector<1x1xf32>
      %cst_25 = arith.constant 1.250000e-01 : f32
      %53 = vector.broadcast %cst_25 : f32 to vector<1x1xf32>
      %54 = arith.mulf %52, %53 : vector<1x1xf32>
      %c0_26 = arith.constant 0 : index
      %c0_27 = arith.constant 0 : index
      %55 = vector.load %arg3[%c0_26, %c0_27] : memref<1x1xf32, #tpu.memory_space<vmem>>, vector<1x1xf32>
      tpu.vector_store %arg3[%c0_26, %c0_27], %54 {strides = array<i32>} : memref<1x1xf32, #tpu.memory_space<vmem>>, vector<1x1xf32>,
    } else {
    }
    return
  }
  func.func @transform_0(%arg0: i32) -> (i32, i32, i32) {
    %c0_i32 = arith.constant 0 : i32
    %c0_i32_0 = arith.constant 0 : i32
    %c0_i32_1 = arith.constant 0 : i32
    return %arg0, %c0_i32, %c0_i32_0 : i32, i32, i32
  }
  func.func @transform_1(%arg0: i32) -> (i32, i32) {
    %c0_i32 = arith.constant 0 : i32
    %c0_i32_0 = arith.constant 0 : i32
    return %arg0, %c0_i32 : i32, i32
  }
  func.func @transform_2(%arg0: i32) -> (i32, i32) {
    %c0_i32 = arith.constant 0 : i32
    %c0_i32_0 = arith.constant 0 : i32
    %c0_i32_1 = arith.constant 0 : i32
    return %c0_i32, %c0_i32_0 : i32, i32
  }
}

</mosaic_0001>

<llo_original>
// kernel: tpu_custom_call.1
$region0: #{tpu_custom_call.1}
  #allocation0 [shape = 'u32[]', space=smem, size = 0x4, offset = 0x4, fixed_abs, tag = 'smem constant byte address 0x4 - core index']
  #allocation1 [shape = 'u32[144,128]{1,0:T(1,128)}', space=vmem, size = 0x12000, scoped, tag = 'internal scratch']
  #allocation2 [shape = 'f32[1,1]{1,0:T(1,128)}', space=vmem, size = 0x200, scoped, tag = 'scratch operand']
  %s0 = inlined_call_operand.vmem [shape: f32[8,3,128], index: 0, kind: input, shape index: {}]
  %s1 = inlined_call_operand.vmem [shape: s32[8,1], index: 1, kind: input, shape index: {}]
  %s2 = inlined_call_operand.hbm [shape: f32[1,1], index: 2, kind: output, shape index: {}]
  %s3 = sld [smem:[#allocation0]]
  $region26: #{tpu_custom_call.1} parent=0
    _
  %s5 = ssub.s32 1, %s3
  %s6 = scalar_select 0, %s5, %s3
  $region1: #{tpu_custom_call.1} parent=0
    #allocation3 [shape = 'u8[512]{0}', space=vmem, size = 0x400, scoped, tag = 'output window, operand 0, single buffered']
    #allocation4 [shape = 's32[1]{0}', space=sflag, size = 0x4, scoped, tag = 'scoped memory for tpu_custom_call.1']
    %7 = vsyncpa [#allocation4], 0
    // Predicated region
    $region2: #{tpu_custom_call.1} parent=1 // pred_check
      _
    $region3: #{tpu_custom_call.1} parent=1 // pred_check_branch
      %9 = sbr.rel (0) target = $region5
    $region4: #{tpu_custom_call.1} parent=1 // pred_region
      _
    $region5: #{tpu_custom_call.1} parent=1 // pred_fallthru
      _
    // Predicated region
    $region6: #{tpu_custom_call.1} parent=1 // pred_check
      _
    $region7: #{tpu_custom_call.1} parent=1 // pred_check_branch
      %11 = sbr.rel (0) target = $region9
    $region8: #{tpu_custom_call.1} parent=1 // pred_region
      _
    $region9: #{tpu_custom_call.1} parent=1 // pred_fallthru
      _
    %p12 = scmp.eq.s32.totalorder 0, 0
    // Predicated region
    $region10: #{tpu_custom_call.1} parent=1 // pred_check
      %p13 = pneg %p12
    $region11: #{tpu_custom_call.1} parent=1 // pred_check_branch
      %15 = sbr.rel (%p13) target = $region13
    $region12: #{tpu_custom_call.1} parent=1 // pred_region
      %vm16 = vcmask 0
      %17 = vst.msk [vmem:[#allocation2] sm:$0x1] %vm16, 0.0
    $region13: #{tpu_custom_call.1} parent=1 // pred_fallthru
      _
    %v18 = vld [vmem:[%s0] sm:$0x7]
    %v19 = vld [vmem:[%s0 + $0x4] sm:$0x7]
    %v20 = vld [vmem:[%s0 + $0x8] sm:$0x7]
    %v21 = vld [vmem:[%s0 + $0xc] sm:$0x7]
    %v22 = vld [vmem:[%s0 + $0x10] sm:$0x7]
    %v23 = vld [vmem:[%s0 + $0x14] sm:$0x7]
    %v24 = vld [vmem:[%s0 + $0x18] sm:$0x7]
    %v25 = vld [vmem:[%s0 + $0x1c] sm:$0x7]
    %v26 = vld [vmem:[%s1] sm:$0xff]
    %vm27 = vcmask 1042432
    %v28 = vsel %vm27, %v18, -inf
    %v29 = vrot.slane %v28, 4
    %v30 = vmax.f32 %v28, %v29
    %v31 = vrot.slane %v30, 2
    %v32 = vmax.f32 %v30, %v31
    %v33 = vrot.slane %v32, 1
    %v34 = vmax.f32 %v32, %v33
    %v35 = vsel %vm27, %v19, -inf
    %v36 = vrot.slane %v35, 4
    %v37 = vmax.f32 %v35, %v36
    %v38 = vrot.slane %v37, 2
    %v39 = vmax.f32 %v37, %v38
    %v40 = vrot.slane %v39, 1
    %v41 = vmax.f32 %v39, %v40
    %v42 = vsel %vm27, %v20, -inf
    %v43 = vrot.slane %v42, 4
    %v44 = vmax.f32 %v42, %v43
    %v45 = vrot.slane %v44, 2
    %v46 = vmax.f32 %v44, %v45
    %v47 = vrot.slane %v46, 1
    %v48 = vmax.f32 %v46, %v47
    %v49 = vsel %vm27, %v21, -inf
    %v50 = vrot.slane %v49, 4
    %v51 = vmax.f32 %v49, %v50
    %v52 = vrot.slane %v51, 2
    %v53 = vmax.f32 %v51, %v52
    %v54 = vrot.slane %v53, 1
    %v55 = vmax.f32 %v53, %v54
    %v56 = vsel %vm27, %v22, -inf
    %v57 = vrot.slane %v56, 4
    %v58 = vmax.f32 %v56, %v57
    %v59 = vrot.slane %v58, 2
    %v60 = vmax.f32 %v58, %v59
    %v61 = vrot.slane %v60, 1
    %v62 = vmax.f32 %v60, %v61
    %v63 = vsel %vm27, %v23, -inf
    %v64 = vrot.slane %v63, 4
    %v65 = vmax.f32 %v63, %v64
    %v66 = vrot.slane %v65, 2
    %v67 = vmax.f32 %v65, %v66
    %v68 = vrot.slane %v67, 1
    %v69 = vmax.f32 %v67, %v68
    %v70 = vsel %vm27, %v24, -inf
    %v71 = vrot.slane %v70, 4
    %v72 = vmax.f32 %v70, %v71
    %v73 = vrot.slane %v72, 2
    %v74 = vmax.f32 %v72, %v73
    %v75 = vrot.slane %v74, 1
    %v76 = vmax.f32 %v74, %v75
    %v77 = vsel %vm27, %v25, -inf
    %v78 = vrot.slane %v77, 4
    %v79 = vmax.f32 %v77, %v78
    %v80 = vrot.slane %v79, 2
    %v81 = vmax.f32 %v79, %v80
    %v82 = vrot.slane %v81, 1
    %v83 = vmax.f32 %v81, %v82
    %v84 = vmul.f32 %v34, %v34
    %v85 = vmul.f32 %v41, %v41
    %v86 = vmul.f32 %v48, %v48
    %v87 = vmul.f32 %v55, %v55
    %v88 = vmul.f32 %v62, %v62
    %v89 = vmul.f32 %v69, %v69
    %v90 = vmul.f32 %v76, %v76
    %v91 = vmul.f32 %v83, %v83
    %v92 = vsub.f32 1.0, %v84
    %v93 = vsub.f32 1.0, %v85
    %v94 = vsub.f32 1.0, %v86
    %v95 = vsub.f32 1.0, %v87
    %v96 = vsub.f32 1.0, %v88
    %v97 = vsub.f32 1.0, %v89
    %v98 = vsub.f32 1.0, %v90
    %v99 = vsub.f32 1.0, %v91
    %v100 = vrsqrt.pop %v92
    %v101 = vmul.f32 %v92, %v100
    %vm102 = vcmp.eq.f32.partialorder %v92, inf
    %v103 = vsel %vm102, %v92, %v101
    %vm104 = vcmp.eq.f32.partialorder %v92, 0.0
    %v105 = vand.u32 %v92, 2147483648
    %v106 = vsel %vm104, %v105, %v103
    %v107 = vrsqrt.pop %v93
    %v108 = vmul.f32 %v93, %v107
    %vm109 = vcmp.eq.f32.partialorder %v93, inf
    %v110 = vsel %vm109, %v93, %v108
    %vm111 = vcmp.eq.f32.partialorder %v93, 0.0
    %v112 = vand.u32 %v93, 2147483648
    %v113 = vsel %vm111, %v112, %v110
    %v114 = vrsqrt.pop %v94
    %v115 = vmul.f32 %v94, %v114
    %vm116 = vcmp.eq.f32.partialorder %v94, inf
    %v117 = vsel %vm116, %v94, %v115
    %vm118 = vcmp.eq.f32.partialorder %v94, 0.0
    %v119 = vand.u32 %v94, 2147483648
    %v120 = vsel %vm118, %v119, %v117
    %v121 = vrsqrt.pop %v95
    %v122 = vmul.f32 %v95, %v121
    %vm123 = vcmp.eq.f32.partialorder %v95, inf
    %v124 = vsel %vm123, %v95, %v122
    %vm125 = vcmp.eq.f32.partialorder %v95, 0.0
    %v126 = vand.u32 %v95, 2147483648
    %v127 = vsel %vm125, %v126, %v124
    %v128 = vrsqrt.pop %v96
    %v129 = vmul.f32 %v96, %v128
    %vm130 = vcmp.eq.f32.partialorder %v96, inf
    %v131 = vsel %vm130, %v96, %v129
    %vm132 = vcmp.eq.f32.partialorder %v96, 0.0
    %v133 = vand.u32 %v96, 2147483648
    %v134 = vsel %vm132, %v133, %v131
    %v135 = vrsqrt.pop %v97
    %v136 = vmul.f32 %v97, %v135
    %vm137 = vcmp.eq.f32.partialorder %v97, inf
    %v138 = vsel %vm137, %v97, %v136
    %vm139 = vcmp.eq.f32.partialorder %v97, 0.0
    %v140 = vand.u32 %v97, 2147483648
    %v141 = vsel %vm139, %v140, %v138
    %v142 = vrsqrt.pop %v98
    %v143 = vmul.f32 %v98, %v142
    %vm144 = vcmp.eq.f32.partialorder %v98, inf
    %v145 = vsel %vm144, %v98, %v143
    %vm146 = vcmp.eq.f32.partialorder %v98, 0.0
    %v147 = vand.u32 %v98, 2147483648
    %v148 = vsel %vm146, %v147, %v145
    %v149 = vrsqrt.pop %v99
    %v150 = vmul.f32 %v99, %v149
    %vm151 = vcmp.eq.f32.partialorder %v99, inf
    %v152 = vsel %vm151, %v99, %v150
    %vm153 = vcmp.eq.f32.partialorder %v99, 0.0
    %v154 = vand.u32 %v99, 2147483648
    %v155 = vsel %vm153, %v154, %v152
    %v156 = vmul.f32 %v34, 0.9800666
    %v157 = vmul.f32 %v41, 0.9800666
    %v158 = vmul.f32 %v48, 0.9800666
    %v159 = vmul.f32 %v55, 0.9800666
    %v160 = vmul.f32 %v62, 0.9800666
    %v161 = vmul.f32 %v69, 0.9800666
    %v162 = vmul.f32 %v76, 0.9800666
    %v163 = vmul.f32 %v83, 0.9800666
    %v164 = vmul.f32 %v106, 0.19866933
    %v165 = vmul.f32 %v113, 0.19866933
    %v166 = vmul.f32 %v120, 0.19866933
    %v167 = vmul.f32 %v127, 0.19866933
    %v168 = vmul.f32 %v134, 0.19866933
    %v169 = vmul.f32 %v141, 0.19866933
    %v170 = vmul.f32 %v148, 0.19866933
    %v171 = vmul.f32 %v155, 0.19866933
    %v172 = vsub.f32 %v156, %v164
    %v173 = vsub.f32 %v157, %v165
    %v174 = vsub.f32 %v158, %v166
    %v175 = vsub.f32 %v159, %v167
    %v176 = vsub.f32 %v160, %v168
    %v177 = vsub.f32 %v161, %v169
    %v178 = vsub.f32 %v162, %v170
    %v179 = vsub.f32 %v163, %v171
    %vm180 = vcmp.gt.f32.partialorder %v34, -0.9800666
    %vm181 = vcmp.gt.f32.partialorder %v41, -0.9800666
    %vm182 = vcmp.gt.f32.partialorder %v48, -0.9800666
    %vm183 = vcmp.gt.f32.partialorder %v55, -0.9800666
    %vm184 = vcmp.gt.f32.partialorder %v62, -0.9800666
    %vm185 = vcmp.gt.f32.partialorder %v69, -0.9800666
    %vm186 = vcmp.gt.f32.partialorder %v76, -0.9800666
    %vm187 = vcmp.gt.f32.partialorder %v83, -0.9800666
    %v188 = vsub.f32 %v34, 0.019933423
    %v189 = vsub.f32 %v41, 0.019933423
    %v190 = vsub.f32 %v48, 0.019933423
    %v191 = vsub.f32 %v55, 0.019933423
    %v192 = vsub.f32 %v62, 0.019933423
    %v193 = vsub.f32 %v69, 0.019933423
    %v194 = vsub.f32 %v76, 0.019933423
    %v195 = vsub.f32 %v83, 0.019933423
    %v196 = vsel %vm180, %v172, %v188
    %v197 = vsel %vm181, %v173, %v189
    %v198 = vsel %vm182, %v174, %v190
    %v199 = vsel %vm183, %v175, %v191
    %v200 = vsel %vm184, %v176, %v192
    %v201 = vsel %vm185, %v177, %v193
    %v202 = vsel %vm186, %v178, %v194
    %v203 = vsel %vm187, %v179, %v195
    %v204 = vlaneseq
    %v205 = vand.u32 %v204, 127
    %206 = vset.pattern.permute.xlu0 0
    %207 = vperm.xlu0 %206, %v26
    %v208 = vpop.permute.xlu0 %207
    %vm209 = vcmp.eq.s32.totalorder %v205, %v208
    %vm218 = vcmask 1041409
    %v219 = vsel %vm218, %v197, %v196
    %vm220 = vcmask 1042434
    %v221 = vsel %vm220, %v198, %v219
    %vm222 = vcmask 1043459
    %v223 = vsel %vm222, %v199, %v221
    %vm224 = vcmask 1044484
    %v225 = vsel %vm224, %v200, %v223
    %vm226 = vcmask 1045509
    %v227 = vsel %vm226, %v201, %v225
    %vm228 = vcmask 1046534
    %v229 = vsel %vm228, %v202, %v227
    %vm230 = vcmask 1047559
    %v231 = vsel %vm230, %v203, %v229
    %v241 = vsel %vm218, %v41, %v34
    %v242 = vsel %vm220, %v48, %v241
    %v243 = vsel %vm222, %v55, %v242
    %v244 = vsel %vm224, %v62, %v243
    %v245 = vsel %vm226, %v69, %v244
    %v246 = vsel %vm228, %v76, %v245
    %v247 = vsel %vm230, %v83, %v246
    %v249 = vsel %vm209, %v231, %v247
    %v250 = vmul.f32 %v249, 32.0
    %vm251 = vcmp.lt.s32.totalorder %v205, 16
    %v252 = vsel %vm251, %v250, -1e+30
    %253 = vmax.xlane.f32.xlu0 %v252
    %v254 = vpop.xlane.xlu0 %253
    %v255 = vsub.f32 %v252, %v254
    %v256 = vmul.f32 %v255, 1.442695
    %v257 = vpow.pop %v256
    %258 = vadd.xlane.f32.xlu0 %v257
    %v259 = vpop.xlane.xlu0 %258
    %v260 = vlog2.pop %v259
    %v261 = vmul.f32 %v260, 0.6931472
    %v262 = vadd.f32 %v254, %v261
    %v263 = vsel %vm209, %v252, 0.0
    %264 = vadd.xlane.f32.xlu0 %v263
    %v265 = vpop.xlane.xlu0 %264
    %v266 = vsub.f32 %v262, %v265
    %v267 = vld [vmem:[#allocation2] sm:$0x1]
    %v268 = vrot.slane %v266, 4
    %v269 = vadd.f32 %v266, %v268
    %v270 = vrot.slane %v269, 2
    %v271 = vadd.f32 %v269, %v270
    %v272 = vrot.slane %v271, 1
    %v273 = vadd.f32 %v271, %v272
    %v274 = vadd.f32 %v267, %v273
    %vm275 = vcmask 0
    %276 = vst.msk [vmem:[#allocation2] sm:$0x1] %vm275, %v274
    // Predicated region
    $region14: #{tpu_custom_call.1} parent=1 // pred_check
      %p277 = pneg %p12
    $region15: #{tpu_custom_call.1} parent=1 // pred_check_branch
      %279 = sbr.rel (%p277) target = $region17
    $region16: #{tpu_custom_call.1} parent=1 // pred_region
      %v280 = vld [vmem:[#allocation2] sm:$0x1]
      %v281 = vmul.f32 %v280, 0.125
      %282 = vst.msk [vmem:[#allocation3] sm:$0x1] %vm275, %v281
    $region17: #{tpu_custom_call.1} parent=1 // pred_fallthru
      _
    // Predicated region
    $region18: #{tpu_custom_call.1} parent=1 // pred_check
      _
    $region19: #{tpu_custom_call.1} parent=1 // pred_check_branch
      %284 = sbr.rel (0) target = $region21
    $region20: #{tpu_custom_call.1} parent=1 // pred_region
      %s286 = ssub.s32 16, 16
      %287 = vsyncadd [#allocation4], %s286
      %s289 = sshll.u32 [#allocation3], 4
      %s290 = int_to_ptr.vmem [resolvable:$true] %s289
      %292 = dma.vmem_to_hbm [thread:$0]  %s290, 16, %s2, [#allocation4]
    $region21: #{tpu_custom_call.1} parent=1 // pred_fallthru
      _
    // Predicated region
    $region22: #{tpu_custom_call.1} parent=1 // pred_check
      _
    $region23: #{tpu_custom_call.1} parent=1 // pred_check_branch
      %294 = sbr.rel (0) target = $region25
    $region24: #{tpu_custom_call.1} parent=1 // pred_region
      %295 = dma.done [#allocation4], 16
    $region25: #{tpu_custom_call.1} parent=1 // pred_fallthru
      _
    %296 = vsyncpa [#allocation4], 1

</llo_original>
